<compile_context>
chip_gen: v7x
topology: tpu7x:2x2x1
jax: 0.10.0
libtpu: 0.0.40
codegen_flags: <defaults>
</compile_context>

<pallas_src>
import functools

import jax
import jax.numpy as jnp
from jax.experimental import pallas as pl
from jax.experimental.pallas import tpu as pltpu


def dqn_fused_kernel(state_ref, w_in_ref, b_in_ref,
                     w_hid_all_ref, b_hid_all_ref,
                     w_out_bd_ref, b_out_all_ref,
                     out_ref):
    # Shared trunk: relu(state @ W_in + b_in)  -> [tb, 64]
    w = jnp.dot(state_ref[...], w_in_ref[...],
                preferred_element_type=jnp.float32) + b_in_ref[...]
    w = jnp.maximum(w, 0.0)

    # All heads' hidden layers in one MXU pass: [tb, 64] @ [64, H*64] -> [tb, H*64]
    x_all = jnp.dot(w, w_hid_all_ref[...],
                    preferred_element_type=jnp.float32) + b_hid_all_ref[...]

    # All heads' output layers via block-diagonal weight: [tb, H*64] @ [H*64, H*A]
    # Single lane-dense store of [tb, H*A].
    out_ref[...] = (jnp.dot(x_all, w_out_bd_ref[...],
                            preferred_element_type=jnp.float32)
                    + b_out_all_ref[...])


def prepare_fused_params(w_in, b_in, w_hid, b_hid, w_out, b_out):
    """Build the fused/concatenated weight layouts ONCE (not per forward call).

    w_in  : [S, 64]       b_in  : [1, 64]
    w_hid : [H, 64, 64]   b_hid : [H, 1, 64]
    w_out : [H, 64, A]    b_out : [H, 1, A]
    """
    heads, hid, act = w_out.shape
    # Concatenate hidden weights along output-feature axis: [64, H*64]
    w_hid_all = jnp.transpose(w_hid, (1, 0, 2)).reshape(hid, heads * hid)
    b_hid_all = b_hid.reshape(1, heads * hid)
    # Block-diagonal output weight: [H*64, H*A]  (zero padding is ~16 KiB here)
    w_out_bd = jax.scipy.linalg.block_diag(*[w_out[i] for i in range(heads)])
    b_out_all = b_out.reshape(1, heads * act)
    return (w_in, b_in,
            w_hid_all.astype(jnp.float32), b_hid_all.astype(jnp.float32),
            w_out_bd.astype(jnp.float32), b_out_all.astype(jnp.float32))


@functools.partial(jax.jit, static_argnames=("heads", "action_size", "tile_b"))
def dqn_forward(state, fused_params, *, heads, action_size, tile_b=None):
    """Fused DQNModel forward. Returns [H, B, A] f32 (head-stacked Q-values)."""
    w_in, b_in, w_hid_all, b_hid_all, w_out_bd, b_out_all = fused_params
    B, S = state.shape
    HA = heads * action_size

    # Batch tiling: single block for small B, tiled (multiple of 8) for large B.
    if tile_b is None:
        tile_b = B if B <= 256 else 256
    assert B % tile_b == 0, "batch must be divisible by tile_b"
    grid = (B // tile_b,)

    def full_spec(arr):
        nd = arr.ndim
        return pl.BlockSpec(arr.shape, lambda i, _nd=nd: (0,) * _nd)

    out = pl.pallas_call(
        dqn_fused_kernel,
        out_shape=jax.ShapeDtypeStruct((B, HA), jnp.float32),
        grid=grid,
        in_specs=[
            pl.BlockSpec((tile_b, S), lambda i: (i, 0)),   # state: tiled over batch
            full_spec(w_in), full_spec(b_in),              # weights: VMEM-resident
            full_spec(w_hid_all), full_spec(b_hid_all),
            full_spec(w_out_bd), full_spec(b_out_all),
        ],
        out_specs=pl.BlockSpec((tile_b, HA), lambda i: (i, 0)),
        compiler_params=pltpu.CompilerParams(
            dimension_semantics=("parallel",)),            # shards batch across TCs on v7x
    )(state, w_in, b_in, w_hid_all, b_hid_all, w_out_bd, b_out_all)

    # [B, H*A] -> [H, B, A]  (pure layout plumbing outside the kernel)
    return jnp.transpose(out.reshape(B, heads, action_size), (1, 0, 2))


def init_params(key, state_size, action_size, heads, hidden=64):
    """Deterministic synthetic init (uniform, PyTorch-style fan_in scaling)."""
    ks = jax.random.split(key, 6)

    def unif(k, shape, fan_in):
        bound = 1.0 / jnp.sqrt(jnp.float32(fan_in))
        return jax.random.uniform(k, shape, jnp.float32, -bound, bound)

    w_in = unif(ks[0], (state_size, hidden), state_size)
    b_in = unif(ks[1], (1, hidden), state_size)
    w_hid = unif(ks[2], (heads, hidden, hidden), hidden)
    b_hid = unif(ks[3], (heads, 1, hidden), hidden)
    w_out = unif(ks[4], (heads, hidden, action_size), hidden)
    b_out = unif(ks[5], (heads, 1, action_size), hidden)
    return w_in, b_in, w_hid, b_hid, w_out, b_out


def reference_forward(state, w_in, b_in, w_hid, b_hid, w_out, b_out):
    """Plain-JAX reference mirroring the PyTorch forward."""
    w = jax.nn.relu(state @ w_in + b_in)
    outs = []
    for i in range(w_hid.shape[0]):
        x = w @ w_hid[i] + b_hid[i]
        outs.append(x @ w_out[i] + b_out[i])
    return jnp.stack(outs, axis=0)


if __name__ == "__main__":
    # LunarLander-ish sizes: state=8, actions=4; small batch & head count.
    STATE_SIZE, ACTION_SIZE, HEADS, BATCH = 8, 4, 4, 8

    key = jax.random.PRNGKey(0)
    k_params, k_state = jax.random.split(key)
    raw_params = init_params(k_params, STATE_SIZE, ACTION_SIZE, HEADS)
    state = jax.random.normal(k_state, (BATCH, STATE_SIZE), jnp.float32)

    # Fused layouts built once, outside the per-step forward.
    fused_params = jax.tree.map(jax.block_until_ready,
                                prepare_fused_params(*raw_params))

    out = dqn_forward(state, fused_params, heads=HEADS, action_size=ACTION_SIZE)
    out = jax.block_until_ready(out)

    ref = reference_forward(state, *raw_params)
    assert out.shape == (HEADS, BATCH, ACTION_SIZE)
    assert jnp.allclose(out, ref, atol=1e-5, rtol=1e-5), "mismatch vs reference"

    print("KERNEL_OK")
</pallas_src>

<mosaic_0001>
module attributes {stable_mosaic.version = 11 : i64} {
  func.func @dqn_fused_kernel(%arg0: i32, %arg1: memref<8x8xf32, #tpu.memory_space<vmem>>, %arg2: memref<8x64xf32, #tpu.memory_space<vmem>>, %arg3: memref<1x64xf32, #tpu.memory_space<vmem>>, %arg4: memref<64x256xf32, #tpu.memory_space<vmem>>, %arg5: memref<1x256xf32, #tpu.memory_space<vmem>>, %arg6: memref<256x16xf32, #tpu.memory_space<vmem>>, %arg7: memref<1x16xf32, #tpu.memory_space<vmem>>, %arg8: memref<8x16xf32, #tpu.memory_space<vmem>>) attributes {dimension_semantics = [#tpu.dimension_semantics<parallel>], iteration_bounds = array<i64: 1>, scalar_prefetch = 0 : i64, scratch_operands = 0 : i64, tpu.core_type = #tpu.core_type<tc>, window_params = [{transform_indices = @transform_0, window_bounds = array<i64: 8, 8>}, {pipeline_mode = #tpu.pipeline_mode<synchronous>, transform_indices = @transform_1, window_bounds = array<i64: 8, 64>}, {pipeline_mode = #tpu.pipeline_mode<synchronous>, transform_indices = @transform_2, window_bounds = array<i64: 1, 64>}, {pipeline_mode = #tpu.pipeline_mode<synchronous>, transform_indices = @transform_3, window_bounds = array<i64: 64, 256>}, {pipeline_mode = #tpu.pipeline_mode<synchronous>, transform_indices = @transform_4, window_bounds = array<i64: 1, 256>}, {pipeline_mode = #tpu.pipeline_mode<synchronous>, transform_indices = @transform_5, window_bounds = array<i64: 256, 16>}, {pipeline_mode = #tpu.pipeline_mode<synchronous>, transform_indices = @transform_6, window_bounds = array<i64: 1, 16>}, {transform_indices = @transform_7, window_bounds = array<i64: 8, 16>}]} {
    %c0 = arith.constant 0 : index
    %c0_0 = arith.constant 0 : index
    %0 = vector.load %arg1[%c0, %c0_0] : memref<8x8xf32, #tpu.memory_space<vmem>>, vector<8x8xf32>
    %c0_1 = arith.constant 0 : index
    %c0_2 = arith.constant 0 : index
    %1 = vector.load %arg2[%c0_1, %c0_2] : memref<8x64xf32, #tpu.memory_space<vmem>>, vector<8x64xf32>
    %cst = arith.constant dense<0.000000e+00> : vector<8x64xf32>
    %2 = tpu.matmul %0, %1, %cst {dimension_numbers = #tpu.dot_dimension_numbers<[1], [0], [0], [1], [0, 0, 1, 1], [], []>} : vector<8x8xf32>, vector<8x64xf32>, vector<8x64xf32> -> vector<8x64xf32>
    %c0_3 = arith.constant 0 : index
    %c0_4 = arith.constant 0 : index
    %3 = vector.load %arg3[%c0_3, %c0_4] : memref<1x64xf32, #tpu.memory_space<vmem>>, vector<1x64xf32>
    %4 = vector.broadcast %3 : vector<1x64xf32> to vector<8x64xf32>
    %5 = arith.addf %2, %4 : vector<8x64xf32>
    %cst_5 = arith.constant 0.000000e+00 : f32
    %6 = vector.broadcast %cst_5 : f32 to vector<8x64xf32>
    %7 = arith.maximumf %5, %6 : vector<8x64xf32>
    %c0_6 = arith.constant 0 : index
    %c0_7 = arith.constant 0 : index
    %8 = vector.load %arg4[%c0_6, %c0_7] : memref<64x256xf32, #tpu.memory_space<vmem>>, vector<64x256xf32>
    %cst_8 = arith.constant dense<0.000000e+00> : vector<8x256xf32>
    %9 = tpu.matmul %7, %8, %cst_8 {dimension_numbers = #tpu.dot_dimension_numbers<[1], [0], [0], [1], [0, 0, 1, 1], [], []>} : vector<8x64xf32>, vector<64x256xf32>, vector<8x256xf32> -> vector<8x256xf32>
    %c0_9 = arith.constant 0 : index
    %c0_10 = arith.constant 0 : index
    %10 = vector.load %arg5[%c0_9, %c0_10] : memref<1x256xf32, #tpu.memory_space<vmem>>, vector<1x256xf32>
    %11 = vector.broadcast %10 : vector<1x256xf32> to vector<8x256xf32>
    %12 = arith.addf %9, %11 : vector<8x256xf32>
    %c0_11 = arith.constant 0 : index
    %c0_12 = arith.constant 0 : index
    %13 = vector.load %arg6[%c0_11, %c0_12] : memref<256x16xf32, #tpu.memory_space<vmem>>, vector<256x16xf32>
    %cst_13 = arith.constant dense<0.000000e+00> : vector<8x16xf32>
    %14 = tpu.matmul %12, %13, %cst_13 {dimension_numbers = #tpu.dot_dimension_numbers<[1], [0], [0], [1], [0, 0, 1, 1], [], []>} : vector<8x256xf32>, vector<256x16xf32>, vector<8x16xf32> -> vector<8x16xf32>
    %c0_14 = arith.constant 0 : index
    %c0_15 = arith.constant 0 : index
    %15 = vector.load %arg7[%c0_14, %c0_15] : memref<1x16xf32, #tpu.memory_space<vmem>>, vector<1x16xf32>
    %16 = vector.broadcast %15 : vector<1x16xf32> to vector<8x16xf32>
    %17 = arith.addf %14, %16 : vector<8x16xf32>
    %c0_16 = arith.constant 0 : index
    %c0_17 = arith.constant 0 : index
    %18 = vector.load %arg8[%c0_16, %c0_17] : memref<8x16xf32, #tpu.memory_space<vmem>>, vector<8x16xf32>
    tpu.vector_store %arg8[%c0_16, %c0_17], %17 {strides = array<i32>} : memref<8x16xf32, #tpu.memory_space<vmem>>, vector<8x16xf32>,
    return
  }
  func.func @transform_0(%arg0: i32) -> (i32, i32) {
    %c0_i32 = arith.constant 0 : i32
    %c0_i32_0 = arith.constant 0 : i32
    return %arg0, %c0_i32 : i32, i32
  }
  func.func @transform_1(%arg0: i32) -> (i32, i32) {
    %c0_i32 = arith.constant 0 : i32
    %c0_i32_0 = arith.constant 0 : i32
    %c0_i32_1 = arith.constant 0 : i32
    return %c0_i32, %c0_i32_0 : i32, i32
  }
  func.func @transform_2(%arg0: i32) -> (i32, i32) {
    %c0_i32 = arith.constant 0 : i32
    %c0_i32_0 = arith.constant 0 : i32
    %c0_i32_1 = arith.constant 0 : i32
    return %c0_i32, %c0_i32_0 : i32, i32
  }
  func.func @transform_3(%arg0: i32) -> (i32, i32) {
    %c0_i32 = arith.constant 0 : i32
    %c0_i32_0 = arith.constant 0 : i32
    %c0_i32_1 = arith.constant 0 : i32
    return %c0_i32, %c0_i32_0 : i32, i32
  }
  func.func @transform_4(%arg0: i32) -> (i32, i32) {
    %c0_i32 = arith.constant 0 : i32
    %c0_i32_0 = arith.constant 0 : i32
    %c0_i32_1 = arith.constant 0 : i32
    return %c0_i32, %c0_i32_0 : i32, i32
  }
  func.func @transform_5(%arg0: i32) -> (i32, i32) {
    %c0_i32 = arith.constant 0 : i32
    %c0_i32_0 = arith.constant 0 : i32
    %c0_i32_1 = arith.constant 0 : i32
    return %c0_i32, %c0_i32_0 : i32, i32
  }
  func.func @transform_6(%arg0: i32) -> (i32, i32) {
    %c0_i32 = arith.constant 0 : i32
    %c0_i32_0 = arith.constant 0 : i32
    %c0_i32_1 = arith.constant 0 : i32
    return %c0_i32, %c0_i32_0 : i32, i32
  }
  func.func @transform_7(%arg0: i32) -> (i32, i32) {
    %c0_i32 = arith.constant 0 : i32
    %c0_i32_0 = arith.constant 0 : i32
    return %arg0, %c0_i32 : i32, i32
  }
}

</mosaic_0001>

<llo_original>
// kernel: dqn_forward.1
$region0: #{dqn_forward.1}
  #allocation0 [shape = 'u32[]', space=smem, size = 0x4, offset = 0x4, fixed_abs, tag = 'smem constant byte address 0x4 - core index']
  #allocation1 [shape = 'u32[144,128]{1,0:T(1,128)}', space=vmem, size = 0x12000, scoped, tag = 'internal scratch']
  %s0 = inlined_call_operand.vmem [shape: f32[8,8], index: 0, kind: input, shape index: {}]
  %s1 = inlined_call_operand.vmem [shape: f32[8,64], index: 1, kind: input, shape index: {}]
  %s2 = inlined_call_operand.vmem [shape: f32[1,64], index: 2, kind: input, shape index: {}]
  %s3 = inlined_call_operand.vmem [shape: f32[64,256], index: 3, kind: input, shape index: {}]
  %s4 = inlined_call_operand.vmem [shape: f32[1,256], index: 4, kind: input, shape index: {}]
  %s5 = inlined_call_operand.vmem [shape: f32[256,16], index: 5, kind: input, shape index: {}]
  %s6 = inlined_call_operand.vmem [shape: f32[1,16], index: 6, kind: input, shape index: {}]
  %s7 = inlined_call_operand.vmem [shape: f32[8,16], index: 7, kind: output, shape index: {}]
  %s8 = sld [smem:[#allocation0]]
  $region38: #{dqn_forward.1} parent=0
    _
  %s10 = ssub.s32 1, %s8
  %s11 = scalar_select 0, %s10, %s8
  // Predicated region
  $region2: #{dqn_forward.1} parent=0 // pred_check
    _
  $region3: #{dqn_forward.1} parent=0 // pred_check_branch
    %13 = sbr.rel (0) target = $region5
  $region4: #{dqn_forward.1} parent=0 // pred_region
    _
  $region5: #{dqn_forward.1} parent=0 // pred_fallthru
    _
  // Predicated region
  $region6: #{dqn_forward.1} parent=0 // pred_check
    _
  $region7: #{dqn_forward.1} parent=0 // pred_check_branch
    %15 = sbr.rel (0) target = $region9
  $region8: #{dqn_forward.1} parent=0 // pred_region
    _
  $region9: #{dqn_forward.1} parent=0 // pred_fallthru
    _
  // Predicated region
  $region10: #{dqn_forward.1} parent=0 // pred_check
    _
  $region11: #{dqn_forward.1} parent=0 // pred_check_branch
    %17 = sbr.rel (0) target = $region13
  $region12: #{dqn_forward.1} parent=0 // pred_region
    _
  $region13: #{dqn_forward.1} parent=0 // pred_fallthru
    _
  // Predicated region
  $region14: #{dqn_forward.1} parent=0 // pred_check
    _
  $region15: #{dqn_forward.1} parent=0 // pred_check_branch
    %19 = sbr.rel (0) target = $region17
  $region16: #{dqn_forward.1} parent=0 // pred_region
    _
  $region17: #{dqn_forward.1} parent=0 // pred_fallthru
    _
  // Predicated region
  $region18: #{dqn_forward.1} parent=0 // pred_check
    _
  $region19: #{dqn_forward.1} parent=0 // pred_check_branch
    %21 = sbr.rel (0) target = $region21
  $region20: #{dqn_forward.1} parent=0 // pred_region
    _
  $region21: #{dqn_forward.1} parent=0 // pred_fallthru
    _
  // Predicated region
  $region22: #{dqn_forward.1} parent=0 // pred_check
    _
  $region23: #{dqn_forward.1} parent=0 // pred_check_branch
    %23 = sbr.rel (0) target = $region25
  $region24: #{dqn_forward.1} parent=0 // pred_region
    _
  $region25: #{dqn_forward.1} parent=0 // pred_fallthru
    _
  // Predicated region
  $region26: #{dqn_forward.1} parent=0 // pred_check
    _
  $region27: #{dqn_forward.1} parent=0 // pred_check_branch
    %25 = sbr.rel (0) target = $region29
  $region28: #{dqn_forward.1} parent=0 // pred_region
    _
  $region29: #{dqn_forward.1} parent=0 // pred_fallthru
    _
  %v26 = vld [vmem:[%s0] sm:$0xff]
  %v27 = vld [vmem:[%s1] sm:$0xff]
  %v28 = vld [vmem:[%s2] sm:$0x1]
  %v30 = vlaneseq
  %v31 = vshrl.u32 %v30, 7
  %v32 = vsub.s32 0, %v31
  %v33 = vrot.slane %v28, %v32
  %vm35 = vcmask 64512
  %v37 = vsel %vm35, %v26, 0
  %39 = vmatprep.subr.mxu0 0.0
  %40 = vmatpush1.msra.mxu0 %v27
  %41 = vmatprep.subr.mxu0 0.0
  %42 = vmatpush1.msra.mxu0 0.0
  %43 = vmatprep.subr.mxu0 0.0
  %44 = vmatpush1.msra.mxu0 0.0
  %45 = vmatprep.subr.mxu0 0.0
  %46 = vmatpush1.msra.mxu0 0.0
  %47 = vmatprep.subr.mxu0 0.0
  %48 = vmatpush1.msra.mxu0 0.0
  %49 = vmatprep.subr.mxu0 0.0
  %50 = vmatpush1.msra.mxu0 0.0
  %51 = vmatprep.subr.mxu0 0.0
  %52 = vmatpush1.msra.mxu0 0.0
  %53 = vmatprep.subr.mxu0 0.0
  %54 = vmatpush1.msra.mxu0 0.0
  %55 = vmatprep.subr.mxu0 0.0
  %56 = vmatpush1.msra.mxu0 0.0
  %57 = vmatprep.subr.mxu0 0.0
  %58 = vmatpush1.msra.mxu0 0.0
  %59 = vmatprep.subr.mxu0 0.0
  %60 = vmatpush1.msra.mxu0 0.0
  %61 = vmatprep.subr.mxu0 0.0
  %62 = vmatpush1.msra.mxu0 0.0
  %63 = vmatprep.subr.mxu0 0.0
  %64 = vmatpush1.msra.mxu0 0.0
  %65 = vmatprep.subr.mxu0 0.0
  %66 = vmatpush1.msra.mxu0 0.0
  %67 = vmatprep.subr.mxu0 0.0
  %68 = vmatpush1.msra.mxu0 0.0
  %69 = vmatprep.subr.mxu0 0.0
  %70 = vmatpush1.msra.mxu0 0.0
  %71 = vmatprep.subr.mxu0 0.0
  %72 = vmatpush1.msra.mxu0 0.0
  %73 = vmatprep.subr.mxu0 0.0
  %74 = vmatpush1.msra.mxu0 0.0
  %75 = vmatprep.subr.mxu0 0.0
  %76 = vmatpush1.msra.mxu0 0.0
  %77 = vmatprep.subr.mxu0 0.0
  %78 = vmatpush1.msra.mxu0 0.0
  %79 = vmatprep.subr.mxu0 0.0
  %80 = vmatpush1.msra.mxu0 0.0
  %81 = vmatprep.subr.mxu0 0.0
  %82 = vmatpush1.msra.mxu0 0.0
  %83 = vmatprep.subr.mxu0 0.0
  %84 = vmatpush1.msra.mxu0 0.0
  %85 = vmatprep.subr.mxu0 0.0
  %86 = vmatpush1.msra.mxu0 0.0
  %87 = vmatprep.subr.mxu0 0.0
  %88 = vmatpush1.msra.mxu0 0.0
  %89 = vmatprep.subr.mxu0 0.0
  %90 = vmatpush1.msra.mxu0 0.0
  %91 = vmatprep.subr.mxu0 0.0
  %92 = vmatpush1.msra.mxu0 0.0
  %93 = vmatprep.subr.mxu0 0.0
  %94 = vmatpush1.msra.mxu0 0.0
  %95 = vmatprep.subr.mxu0 0.0
  %96 = vmatpush1.msra.mxu0 0.0
  %97 = vmatprep.subr.mxu0 0.0
  %98 = vmatpush1.msra.mxu0 0.0
  %99 = vmatprep.subr.mxu0 0.0
  %100 = vmatpush1.msra.mxu0 0.0
  %101 = vmatprep.subr.mxu0 0.0
  %102 = vmatpush1.msra.mxu0 0.0
  %103 = vmatprep.mubr.f32.mxu0 0.0
  %104 = vmatmul.mubr.f32.gmra.mrb[0].mxu0 %v37
  %v105 = vpop.f32.mrb[0].mxu0
  %v106 = vadd.f32 %v33, %v105
  %v107 = vpop.f32.mrb[0].mxu0
  %108 = vdwg.mxu0
  %v109 = vmax.f32 %v106, 0.0
  %v110 = vld [vmem:[%s3] sm:$0xff]
  %v111 = vld [vmem:[%s3 + $0x8] sm:$0xff]
  %v112 = vld [vmem:[%s3 + $0x10] sm:$0xff]
  %v113 = vld [vmem:[%s3 + $0x18] sm:$0xff]
  %v114 = vld [vmem:[%s3 + $0x20] sm:$0xff]
  %v115 = vld [vmem:[%s3 + $0x28] sm:$0xff]
  %v116 = vld [vmem:[%s3 + $0x30] sm:$0xff]
  %v117 = vld [vmem:[%s3 + $0x38] sm:$0xff]
  %v118 = vld [vmem:[%s3 + $0x40] sm:$0xff]
  %v119 = vld [vmem:[%s3 + $0x48] sm:$0xff]
  %v120 = vld [vmem:[%s3 + $0x50] sm:$0xff]
  %v121 = vld [vmem:[%s3 + $0x58] sm:$0xff]
  %v122 = vld [vmem:[%s3 + $0x60] sm:$0xff]
  %v123 = vld [vmem:[%s3 + $0x68] sm:$0xff]
  %v124 = vld [vmem:[%s3 + $0x70] sm:$0xff]
  %v125 = vld [vmem:[%s3 + $0x78] sm:$0xff]
  %v126 = vld [vmem:[%s4] sm:$0x3]
  %v128 = vlaneseq
  %v129 = vshrl.u32 %v128, 7
  %v130 = vsub.s32 0, %v129
  %v131 = vrot.slane %v126, %v130
  %v132 = vlaneseq
  %v133 = vshrl.u32 %v132, 7
  %v134 = vsub.s32 1, %v133
  %v135 = vrot.slane %v126, %v134
  %vm138 = vcmask 523264
  %v140 = vsel %vm138, %v109, 0
  %142 = vmatprep.subr.mxu0 %v111
  %143 = vmatpush1.msra.mxu0 %v110
  %144 = vmatprep.subr.mxu0 %v113
  %145 = vmatpush1.msra.mxu0 %v112
  %146 = vmatprep.subr.mxu0 %v115
  %147 = vmatpush1.msra.mxu0 %v114
  %148 = vmatprep.subr.mxu0 %v117
  %149 = vmatpush1.msra.mxu0 %v116
  %150 = vmatprep.subr.mxu0 %v119
  %151 = vmatpush1.msra.mxu0 %v118
  %152 = vmatprep.subr.mxu0 %v121
  %153 = vmatpush1.msra.mxu0 %v120
  %154 = vmatprep.subr.mxu0 %v123
  %155 = vmatpush1.msra.mxu0 %v122
  %156 = vmatprep.subr.mxu0 %v125
  %157 = vmatpush1.msra.mxu0 %v124
  %158 = vmatprep.subr.mxu0 0.0
  %159 = vmatpush1.msra.mxu0 0.0
  %160 = vmatprep.subr.mxu0 0.0
  %161 = vmatpush1.msra.mxu0 0.0
  %162 = vmatprep.subr.mxu0 0.0
  %163 = vmatpush1.msra.mxu0 0.0
  %164 = vmatprep.subr.mxu0 0.0
  %165 = vmatpush1.msra.mxu0 0.0
  %166 = vmatprep.subr.mxu0 0.0
  %167 = vmatpush1.msra.mxu0 0.0
  %168 = vmatprep.subr.mxu0 0.0
  %169 = vmatpush1.msra.mxu0 0.0
  %170 = vmatprep.subr.mxu0 0.0
  %171 = vmatpush1.msra.mxu0 0.0
  %172 = vmatprep.subr.mxu0 0.0
  %173 = vmatpush1.msra.mxu0 0.0
  %174 = vmatprep.subr.mxu0 0.0
  %175 = vmatpush1.msra.mxu0 0.0
  %176 = vmatprep.subr.mxu0 0.0
  %177 = vmatpush1.msra.mxu0 0.0
  %178 = vmatprep.subr.mxu0 0.0
  %179 = vmatpush1.msra.mxu0 0.0
  %180 = vmatprep.subr.mxu0 0.0
  %181 = vmatpush1.msra.mxu0 0.0
  %182 = vmatprep.subr.mxu0 0.0
  %183 = vmatpush1.msra.mxu0 0.0
  %184 = vmatprep.subr.mxu0 0.0
  %185 = vmatpush1.msra.mxu0 0.0
  %186 = vmatprep.subr.mxu0 0.0
  %187 = vmatpush1.msra.mxu0 0.0
  %188 = vmatprep.subr.mxu0 0.0
  %189 = vmatpush1.msra.mxu0 0.0
  %190 = vmatprep.subr.mxu0 0.0
  %191 = vmatpush1.msra.mxu0 0.0
  %192 = vmatprep.subr.mxu0 0.0
  %193 = vmatpush1.msra.mxu0 0.0
  %194 = vmatprep.subr.mxu0 0.0
  %195 = vmatpush1.msra.mxu0 0.0
  %196 = vmatprep.subr.mxu0 0.0
  %197 = vmatpush1.msra.mxu0 0.0
  %198 = vmatprep.subr.mxu0 0.0
  %199 = vmatpush1.msra.mxu0 0.0
  %200 = vmatprep.subr.mxu0 0.0
  %201 = vmatpush1.msra.mxu0 0.0
  %202 = vmatprep.subr.mxu0 0.0
  %203 = vmatpush1.msra.mxu0 0.0
  %204 = vmatprep.subr.mxu0 0.0
  %205 = vmatpush1.msra.mxu0 0.0
  %206 = vmatprep.mubr.f32.mxu0 0.0
  %207 = vmatmul.mubr.f32.gmra.mrb[0].mxu0 %v140
  %v208 = vpop.f32.mrb[0].mxu0
  %v209 = vadd.f32 %v131, %v208
  %v210 = vpop.f32.mrb[0].mxu0
  %v211 = vadd.f32 %v135, %v210
  %212 = vdwg.mxu0
  %v213 = vld [vmem:[%s5] sm:$0xff]
  %v214 = vld [vmem:[%s5 + $0x8] sm:$0xff]
  %v215 = vld [vmem:[%s5 + $0x10] sm:$0xff]
  %v216 = vld [vmem:[%s5 + $0x18] sm:$0xff]
  %v217 = vld [vmem:[%s5 + $0x20] sm:$0xff]
  %v218 = vld [vmem:[%s5 + $0x28] sm:$0xff]
  %v219 = vld [vmem:[%s5 + $0x30] sm:$0xff]
  %v220 = vld [vmem:[%s5 + $0x38] sm:$0xff]
  %v221 = vld [vmem:[%s5 + $0x40] sm:$0xff]
  %v222 = vld [vmem:[%s5 + $0x48] sm:$0xff]
  %v223 = vld [vmem:[%s5 + $0x50] sm:$0xff]
  %v224 = vld [vmem:[%s5 + $0x58] sm:$0xff]
  %v225 = vld [vmem:[%s5 + $0x60] sm:$0xff]
  %v226 = vld [vmem:[%s5 + $0x68] sm:$0xff]
  %v227 = vld [vmem:[%s5 + $0x70] sm:$0xff]
  %v228 = vld [vmem:[%s5 + $0x78] sm:$0xff]
  %v229 = vld [vmem:[%s5 + $0x80] sm:$0xff]
  %v230 = vld [vmem:[%s5 + $0x88] sm:$0xff]
  %v231 = vld [vmem:[%s5 + $0x90] sm:$0xff]
  %v232 = vld [vmem:[%s5 + $0x98] sm:$0xff]
  %v233 = vld [vmem:[%s5 + $0xa0] sm:$0xff]
  %v234 = vld [vmem:[%s5 + $0xa8] sm:$0xff]
  %v235 = vld [vmem:[%s5 + $0xb0] sm:$0xff]
  %v236 = vld [vmem:[%s5 + $0xb8] sm:$0xff]
  %v237 = vld [vmem:[%s5 + $0xc0] sm:$0xff]
  %v238 = vld [vmem:[%s5 + $0xc8] sm:$0xff]
  %v239 = vld [vmem:[%s5 + $0xd0] sm:$0xff]
  %v240 = vld [vmem:[%s5 + $0xd8] sm:$0xff]
  %v241 = vld [vmem:[%s5 + $0xe0] sm:$0xff]
  %v242 = vld [vmem:[%s5 + $0xe8] sm:$0xff]
  %v243 = vld [vmem:[%s5 + $0xf0] sm:$0xff]
  %v244 = vld [vmem:[%s5 + $0xf8] sm:$0xff]
  %v245 = vld [vmem:[%s6] sm:$0x1]
  %v247 = vlaneseq
  %v248 = vshrl.u32 %v247, 7
  %v249 = vsub.s32 0, %v248
  %v250 = vrot.slane %v245, %v249
  %252 = vmatprep.subr.mxu0 0.0
  %253 = vmatpush1.msra.mxu0 %v213
  %254 = vmatprep.subr.mxu0 0.0
  %255 = vmatpush1.msra.mxu0 %v214
  %256 = vmatprep.subr.mxu0 0.0
  %257 = vmatpush1.msra.mxu0 %v215
  %258 = vmatprep.subr.mxu0 0.0
  %259 = vmatpush1.msra.mxu0 %v216
  %260 = vmatprep.subr.mxu0 0.0
  %261 = vmatpush1.msra.mxu0 %v217
  %262 = vmatprep.subr.mxu0 0.0
  %263 = vmatpush1.msra.mxu0 %v218
  %264 = vmatprep.subr.mxu0 0.0
  %265 = vmatpush1.msra.mxu0 %v219
  %266 = vmatprep.subr.mxu0 0.0
  %267 = vmatpush1.msra.mxu0 %v220
  %268 = vmatprep.subr.mxu0 0.0
  %269 = vmatpush1.msra.mxu0 %v221
  %270 = vmatprep.subr.mxu0 0.0
  %271 = vmatpush1.msra.mxu0 %v222
  %272 = vmatprep.subr.mxu0 0.0
  %273 = vmatpush1.msra.mxu0 %v223
  %274 = vmatprep.subr.mxu0 0.0
  %275 = vmatpush1.msra.mxu0 %v224
  %276 = vmatprep.subr.mxu0 0.0
  %277 = vmatpush1.msra.mxu0 %v225
  %278 = vmatprep.subr.mxu0 0.0
  %279 = vmatpush1.msra.mxu0 %v226
  %280 = vmatprep.subr.mxu0 0.0
  %281 = vmatpush1.msra.mxu0 %v227
  %282 = vmatprep.subr.mxu0 0.0
  %283 = vmatpush1.msra.mxu0 %v228
  %284 = vmatprep.subr.mxu0 0.0
  %285 = vmatpush1.msra.mxu0 %v229
  %286 = vmatprep.subr.mxu0 0.0
  %287 = vmatpush1.msra.mxu0 %v230
  %288 = vmatprep.subr.mxu0 0.0
  %289 = vmatpush1.msra.mxu0 %v231
  %290 = vmatprep.subr.mxu0 0.0
  %291 = vmatpush1.msra.mxu0 %v232
  %292 = vmatprep.subr.mxu0 0.0
  %293 = vmatpush1.msra.mxu0 %v233
  %294 = vmatprep.subr.mxu0 0.0
  %295 = vmatpush1.msra.mxu0 %v234
  %296 = vmatprep.subr.mxu0 0.0
  %297 = vmatpush1.msra.mxu0 %v235
  %298 = vmatprep.subr.mxu0 0.0
  %299 = vmatpush1.msra.mxu0 %v236
  %300 = vmatprep.subr.mxu0 0.0
  %301 = vmatpush1.msra.mxu0 %v237
  %302 = vmatprep.subr.mxu0 0.0
  %303 = vmatpush1.msra.mxu0 %v238
  %304 = vmatprep.subr.mxu0 0.0
  %305 = vmatpush1.msra.mxu0 %v239
  %306 = vmatprep.subr.mxu0 0.0
  %307 = vmatpush1.msra.mxu0 %v240
  %308 = vmatprep.subr.mxu0 0.0
  %309 = vmatpush1.msra.mxu0 %v241
  %310 = vmatprep.subr.mxu0 0.0
  %311 = vmatpush1.msra.mxu0 %v242
  %312 = vmatprep.subr.mxu0 0.0
  %313 = vmatpush1.msra.mxu0 %v243
  %314 = vmatprep.subr.mxu0 0.0
  %315 = vmatpush1.msra.mxu0 %v244
  %316 = vmatprep.mubr.f32.mxu0 %v211
  %317 = vmatmul.mubr.f32.gmra.mrb[0].mxu0 %v209
  %v318 = vpop.f32.mrb[0].mxu0
  %v319 = vadd.f32 %v250, %v318
  %v320 = vpop.f32.mrb[0].mxu0
  %321 = vdwg.mxu0
  %vm322 = vcmask 130048
  %323 = vst.msk [vmem:[%s7] sm:$0xff] %vm322, %v319
  // Predicated region
  $region30: #{dqn_forward.1} parent=0 // pred_check
    _
  $region31: #{dqn_forward.1} parent=0 // pred_check_branch
    %325 = sbr.rel (0) target = $region33
  $region32: #{dqn_forward.1} parent=0 // pred_region
    _
  $region33: #{dqn_forward.1} parent=0 // pred_fallthru
    _
  // Predicated region
  $region34: #{dqn_forward.1} parent=0 // pred_check
    _
  $region35: #{dqn_forward.1} parent=0 // pred_check_branch
    %327 = sbr.rel (0) target = $region37
  $region36: #{dqn_forward.1} parent=0 // pred_region
    _
  $region37: #{dqn_forward.1} parent=0 // pred_fallthru
    _

</llo_original>
